<compile_context>
chip_gen: v7x
topology: tpu7x:2x2x1
jax: 0.10.0
libtpu: 0.0.40
codegen_flags: <defaults>
</compile_context>

<pallas_src>
import functools
import math

import jax
import jax.numpy as jnp
from jax.experimental import pallas as pl
from jax.experimental.pallas import tpu as pltpu


def _round_up(n, m):
    return ((n + m - 1) // m) * m


def _dense_attention_kernel(x_ref, wkv_ref, bkv_ref, wq_ref, bq_ref, mask_ref,
                            woT_ref, bo_ref, o_ref, ao_scr, ao2_scr,
                            *, hidden_dim):
    f32, bf16 = jnp.float32, jnp.bfloat16
    H = hidden_dim                      # real hidden dim
    B = x_ref.shape[0]                  # batch
    Hp = mask_ref.shape[1]              # hidden dim padded to 128
    G = H // B                          # asserted host-side: H % B == 0

    x = x_ref[...]                                                    # (B, Fp) bf16

    # ---- fused K|V projection: one bf16 MXU matmul, f32 acc, f32 bias ----
    kv = jnp.dot(x, wkv_ref[...], preferred_element_type=f32) + bkv_ref[...]   # (B, 2Hp)
    k = kv[:, :Hp]                                                    # (B, Hp) f32
    v = kv[:, Hp:]                                                    # (B, Hp) f32

    # ---- Q projection, produced directly as q.T via transpose-RHS dot ----
    # (scale 1/sqrt(H) pre-folded into wq / bq; only real rounded-to-8 rows)
    qT = jax.lax.dot_general(wq_ref[...], x, (((1,), (1,)), ((), ())),
                             preferred_element_type=f32) + bq_ref[...]          # (Hr, B)

    # ---- attention scores + additive key-padding mask (0 / -1e30 row) ----
    s = jnp.dot(qT, k, preferred_element_type=f32) + mask_ref[...]              # (Hr, Hp)

    # ---- softmax over keys (f32, exact divide for parity) ----
    s_max = jnp.max(s, axis=-1, keepdims=True)
    p = jnp.exp(s - s_max)
    p = p / jnp.sum(p, axis=-1, keepdims=True)

    # ---- attn_output = attn_weights @ v.T  (transpose-RHS dot) ----
    ao = jax.lax.dot_general(p, v, (((1,), (1,)), ((), ())),
                             preferred_element_type=f32)                        # (Hr, B)

    # ---- torch.reshape(attn_output, (B, -1)): row-major (H, B) -> (B, H) ----
    # G = H // B sublane-strided gathers ((B, B) tile each) through VMEM
    # scratch, instead of the old H-step per-row scatter loop.
    ao_scr[...] = ao
    ao2_scr[...] = jnp.zeros_like(ao2_scr)         # zero the Hp - H padded lanes
    for r in range(G):                             # static, small trip count
        ao2_scr[:, r * B:(r + 1) * B] = ao_scr[pl.ds(r, B, stride=G), :]

    # ---- output dense: lane-dense (B, Hp) @ (Hp, Op), bf16 MXU, f32 acc ----
    ao2 = ao2_scr[...].astype(bf16)                                             # (B, Hp)
    o_ref[...] = (jnp.dot(ao2, woT_ref[...], preferred_element_type=f32)
                  + bo_ref[...])                                                # (B, Op)


def dense_attention(x, params):
    B, F = x.shape
    H = params["wk"].shape[0]
    O = params["wo"].shape[0]
    if H % B != 0:
        # TODO(synk): general flatten (source rows straddling output rows when
        # H % batch != 0) is not implemented in this kernel.
        raise NotImplementedError("dense_attention kernel requires hidden_dim % batch == 0")
    scale = 1.0 / math.sqrt(float(H))

    Fp = _round_up(F, 128)
    Hp = _round_up(H, 128)
    Op = _round_up(O, 128)
    Hr = _round_up(H, 8)        # score-row count (sublane aligned, not 128)
    f32, bf16 = jnp.float32, jnp.bfloat16

    def pad2(w, r, c):
        return jnp.pad(w, ((0, r - w.shape[0]), (0, c - w.shape[1])))

    # ---- host-side packing: pad lane dims to 128, pre-transpose, fuse K|V,
    # fold the 1/sqrt(H) scale into the Q weight/bias, cast matmul operands to
    # bf16, precompute the additive key-padding mask. ----
    x_p = jnp.pad(x, ((0, 0), (0, Fp - F))).astype(bf16)                        # (B, Fp)

    wkT = pad2(params["wk"].T, Fp, Hp)
    wvT = pad2(params["wv"].T, Fp, Hp)
    wkv = jnp.concatenate([wkT, wvT], axis=1).astype(bf16)                      # (Fp, 2Hp)
    bkv = jnp.concatenate([jnp.pad(params["bk"], (0, Hp - H)),
                           jnp.pad(params["bv"], (0, Hp - H))]
                          ).reshape(1, 2 * Hp).astype(f32)                      # (1, 2Hp)

    wq = pad2(params["wq"] * scale, Hr, Fp).astype(bf16)                        # (Hr, Fp)
    bq = jnp.pad(params["bq"] * scale, (0, Hr - H)).reshape(Hr, 1).astype(f32)  # (Hr, 1)

    mask = jnp.where(jnp.arange(Hp) < H, 0.0, -1e30).astype(f32).reshape(1, Hp)

    woT = pad2(params["wo"].T, Hp, Op).astype(bf16)                             # (Hp, Op)
    bo = jnp.pad(params["bo"], (0, Op - O)).reshape(1, Op).astype(f32)          # (1, Op)

    vmem = pl.BlockSpec(memory_space=pltpu.MemorySpace.VMEM)

    cost = pl.CostEstimate(
        flops=(2 * B * Fp * 2 * Hp          # fused K|V projection
               + 2 * Hr * Fp * B            # Q projection (q.T)
               + 2 * Hr * B * Hp            # scores
               + 2 * Hr * Hp * B            # attn_weights @ v.T
               + 2 * B * Hp * Op),          # output dense
        transcendentals=Hr * Hp,
        bytes_accessed=(B * Fp + Fp * 2 * Hp + Hr * Fp + Hp * Op) * 2
                       + (2 * Hp + Hr + Hp + Op) * 4 + B * Op * 4,
    )

    out_pad = pl.pallas_call(
        functools.partial(_dense_attention_kernel, hidden_dim=H),
        out_shape=jax.ShapeDtypeStruct((B, Op), f32),
        in_specs=[vmem] * 8,
        out_specs=vmem,
        scratch_shapes=[pltpu.VMEM((Hr, B), f32),     # attn_output (H, B)
                        pltpu.VMEM((B, Hp), f32)],    # flattened, lane-dense
        compiler_params=pltpu.CompilerParams(vmem_limit_bytes=32 * 1024 * 1024),
        cost_estimate=cost,
    )(x_p, wkv, bkv, wq, bq, mask, woT, bo)

    return out_pad[:, :O]


def init_params(key, in_features, hidden_dim, out_features):
    """Deterministic init matching nn.Linear + kaiming_uniform_(a=sqrt(5)):
    both weight and bias ~ U(-1/sqrt(fan_in), 1/sqrt(fan_in))."""
    def linear(k, out_d, in_d):
        kw, kb = jax.random.split(k)
        bound = 1.0 / math.sqrt(in_d)
        w = jax.random.uniform(kw, (out_d, in_d), jnp.float32, -bound, bound)
        b = jax.random.uniform(kb, (out_d,), jnp.float32, -bound, bound)
        return w, b

    ks = jax.random.split(key, 4)
    wk, bk = linear(ks[0], hidden_dim, in_features)
    wq, bq = linear(ks[1], hidden_dim, in_features)
    wv, bv = linear(ks[2], hidden_dim, in_features)
    wo, bo = linear(ks[3], out_features, hidden_dim)
    return dict(wk=wk, bk=bk, wq=wq, bq=bq, wv=wv, bv=bv, wo=wo, bo=bo)


def dense_attention_ref(x, params):
    """Pure-JAX f32 reference mirroring the PyTorch forward exactly."""
    B, _ = x.shape
    H = params["wk"].shape[0]
    k = x @ params["wk"].T + params["bk"]
    q = x @ params["wq"].T + params["bq"]
    v = x @ params["wv"].T + params["bv"]
    s = (q.T @ k) / math.sqrt(float(H))
    w = jax.nn.softmax(s, axis=-1)
    ao = w @ v.T                      # (H, B)
    ao = ao.reshape(B, -1)            # row-major flat reshape, as torch.reshape
    return ao @ params["wo"].T + params["bo"]


if __name__ == "__main__":
    B, IN_F, HID, OUT_F = 8, 16, 32, 16

    key = jax.random.PRNGKey(0)
    k_x, k_p = jax.random.split(key)
    x = jax.random.normal(k_x, (B, IN_F), dtype=jnp.float32)
    params = init_params(k_p, IN_F, HID, OUT_F)

    out = dense_attention(x, params)
    out = jax.block_until_ready(out)

    ref = dense_attention_ref(x, params)
    assert out.shape == (B, OUT_F)
    # bf16 projection/output matmul operands (f32 accumulation) -> loosened tol
    assert jnp.allclose(out, ref, atol=2e-2, rtol=2e-2), (
        f"max abs err = {jnp.max(jnp.abs(out - ref))}")

    print("KERNEL_OK")
</pallas_src>

<mosaic_0001>
module attributes {stable_mosaic.version = 11 : i64} {
  func.func @_dense_attention_kernel(%arg0: memref<8x128xbf16, #tpu.memory_space<vmem>>, %arg1: memref<128x256xbf16, #tpu.memory_space<vmem>>, %arg2: memref<1x256xf32, #tpu.memory_space<vmem>>, %arg3: memref<32x128xbf16, #tpu.memory_space<vmem>>, %arg4: memref<32x1xf32, #tpu.memory_space<vmem>>, %arg5: memref<1x128xf32, #tpu.memory_space<vmem>>, %arg6: memref<128x128xbf16, #tpu.memory_space<vmem>>, %arg7: memref<1x128xf32, #tpu.memory_space<vmem>>, %arg8: memref<8x128xf32, #tpu.memory_space<vmem>>, %arg9: memref<32x8xf32, #tpu.memory_space<vmem>>, %arg10: memref<8x128xf32, #tpu.memory_space<vmem>>) attributes {dimension_semantics = [], scalar_prefetch = 0 : i64, scratch_operands = 2 : i64, tpu.core_type = #tpu.core_type<tc>} {
    %c0 = arith.constant 0 : index
    %c0_0 = arith.constant 0 : index
    %0 = vector.load %arg0[%c0, %c0_0] : memref<8x128xbf16, #tpu.memory_space<vmem>>, vector<8x128xbf16>
    %c0_1 = arith.constant 0 : index
    %c0_2 = arith.constant 0 : index
    %1 = vector.load %arg1[%c0_1, %c0_2] : memref<128x256xbf16, #tpu.memory_space<vmem>>, vector<128x256xbf16>
    %cst = arith.constant dense<0.000000e+00> : vector<8x256xf32>
    %2 = tpu.matmul %0, %1, %cst {dimension_numbers = #tpu.dot_dimension_numbers<[1], [0], [0], [1], [0, 0, 1, 1], [], []>} : vector<8x128xbf16>, vector<128x256xbf16>, vector<8x256xf32> -> vector<8x256xf32>
    %c0_3 = arith.constant 0 : index
    %c0_4 = arith.constant 0 : index
    %3 = vector.load %arg2[%c0_3, %c0_4] : memref<1x256xf32, #tpu.memory_space<vmem>>, vector<1x256xf32>
    %4 = vector.broadcast %3 : vector<1x256xf32> to vector<8x256xf32>
    %5 = arith.addf %2, %4 : vector<8x256xf32>
    %6 = vector.extract_strided_slice %5 {offsets = [0, 0], sizes = [8, 128], strides = [1, 1]} : vector<8x256xf32> to vector<8x128xf32>
    %7 = vector.extract_strided_slice %5 {offsets = [0, 128], sizes = [8, 128], strides = [1, 1]} : vector<8x256xf32> to vector<8x128xf32>
    %c0_5 = arith.constant 0 : index
    %c0_6 = arith.constant 0 : index
    %8 = vector.load %arg3[%c0_5, %c0_6] : memref<32x128xbf16, #tpu.memory_space<vmem>>, vector<32x128xbf16>
    %cst_7 = arith.constant dense<0.000000e+00> : vector<32x8xf32>
    %9 = tpu.matmul %8, %0, %cst_7 {dimension_numbers = #tpu.dot_dimension_numbers<[1], [1], [0], [0], [0, 0, 1, 0], [], []>} : vector<32x128xbf16>, vector<8x128xbf16>, vector<32x8xf32> -> vector<32x8xf32>
    %c0_8 = arith.constant 0 : index
    %c0_9 = arith.constant 0 : index
    %10 = vector.load %arg4[%c0_8, %c0_9] : memref<32x1xf32, #tpu.memory_space<vmem>>, vector<32x1xf32>
    %11 = vector.broadcast %10 : vector<32x1xf32> to vector<32x8xf32>
    %12 = arith.addf %9, %11 : vector<32x8xf32>
    %cst_10 = arith.constant dense<0.000000e+00> : vector<32x128xf32>
    %13 = tpu.matmul %12, %6, %cst_10 {dimension_numbers = #tpu.dot_dimension_numbers<[1], [0], [0], [1], [0, 0, 1, 1], [], []>} : vector<32x8xf32>, vector<8x128xf32>, vector<32x128xf32> -> vector<32x128xf32>
    %c0_11 = arith.constant 0 : index
    %c0_12 = arith.constant 0 : index
    %14 = vector.load %arg5[%c0_11, %c0_12] : memref<1x128xf32, #tpu.memory_space<vmem>>, vector<1x128xf32>
    %15 = vector.broadcast %14 : vector<1x128xf32> to vector<32x128xf32>
    %16 = arith.addf %13, %15 : vector<32x128xf32>
    %cst_13 = arith.constant dense<0xFF800000> : vector<32xf32>
    %17 = vector.multi_reduction <maximumf>, %16, %cst_13 [1] : vector<32x128xf32> to vector<32xf32>
    %18 = vector.shape_cast %17 : vector<32xf32> to vector<32x1xf32>
    %19 = vector.broadcast %18 : vector<32x1xf32> to vector<32x128xf32>
    %20 = arith.subf %16, %19 : vector<32x128xf32>
    %21 = math.exp %20 : vector<32x128xf32>
    %cst_14 = arith.constant dense<0.000000e+00> : vector<32xf32>
    %22 = vector.multi_reduction <add>, %21, %cst_14 [1] : vector<32x128xf32> to vector<32xf32>
    %23 = vector.shape_cast %22 : vector<32xf32> to vector<32x1xf32>
    %24 = vector.broadcast %23 : vector<32x1xf32> to vector<32x128xf32>
    %25 = arith.divf %21, %24 : vector<32x128xf32>
    %cst_15 = arith.constant dense<0.000000e+00> : vector<32x8xf32>
    %26 = tpu.matmul %25, %7, %cst_15 {dimension_numbers = #tpu.dot_dimension_numbers<[1], [1], [0], [0], [0, 0, 1, 0], [], []>} : vector<32x128xf32>, vector<8x128xf32>, vector<32x8xf32> -> vector<32x8xf32>
    %c0_16 = arith.constant 0 : index
    %c0_17 = arith.constant 0 : index
    %27 = vector.load %arg9[%c0_16, %c0_17] : memref<32x8xf32, #tpu.memory_space<vmem>>, vector<32x8xf32>
    tpu.vector_store %arg9[%c0_16, %c0_17], %26 {strides = array<i32>} : memref<32x8xf32, #tpu.memory_space<vmem>>, vector<32x8xf32>,
    %cst_18 = arith.constant 0.000000e+00 : f32
    %28 = vector.broadcast %cst_18 : f32 to vector<8x128xf32>
    %c0_19 = arith.constant 0 : index
    %c0_20 = arith.constant 0 : index
    %29 = vector.load %arg10[%c0_19, %c0_20] : memref<8x128xf32, #tpu.memory_space<vmem>>, vector<8x128xf32>
    tpu.vector_store %arg10[%c0_19, %c0_20], %28 {strides = array<i32>} : memref<8x128xf32, #tpu.memory_space<vmem>>, vector<8x128xf32>,
    %c0_21 = arith.constant 0 : index
    %c0_22 = arith.constant 0 : index
    %30 = tpu.strided_load %arg9[%c0_21, %c0_22] {strides = array<i32: 4, 1>} : memref<32x8xf32, #tpu.memory_space<vmem>>, vector<8x8xf32>
    %c0_23 = arith.constant 0 : index
    %c0_24 = arith.constant 0 : index
    %31 = vector.load %arg10[%c0_23, %c0_24] : memref<8x128xf32, #tpu.memory_space<vmem>>, vector<8x8xf32>
    tpu.vector_store %arg10[%c0_23, %c0_24], %30 {strides = array<i32>} : memref<8x128xf32, #tpu.memory_space<vmem>>, vector<8x8xf32>,
    %c1 = arith.constant 1 : index
    %c0_25 = arith.constant 0 : index
    %32 = tpu.strided_load %arg9[%c1, %c0_25] {strides = array<i32: 4, 1>} : memref<32x8xf32, #tpu.memory_space<vmem>>, vector<8x8xf32>
    %c0_26 = arith.constant 0 : index
    %c8 = arith.constant 8 : index
    %33 = vector.load %arg10[%c0_26, %c8] : memref<8x128xf32, #tpu.memory_space<vmem>>, vector<8x8xf32>
    tpu.vector_store %arg10[%c0_26, %c8], %32 {strides = array<i32>} : memref<8x128xf32, #tpu.memory_space<vmem>>, vector<8x8xf32>,
    %c2 = arith.constant 2 : index
    %c0_27 = arith.constant 0 : index
    %34 = tpu.strided_load %arg9[%c2, %c0_27] {strides = array<i32: 4, 1>} : memref<32x8xf32, #tpu.memory_space<vmem>>, vector<8x8xf32>
    %c0_28 = arith.constant 0 : index
    %c16 = arith.constant 16 : index
    %35 = vector.load %arg10[%c0_28, %c16] : memref<8x128xf32, #tpu.memory_space<vmem>>, vector<8x8xf32>
    tpu.vector_store %arg10[%c0_28, %c16], %34 {strides = array<i32>} : memref<8x128xf32, #tpu.memory_space<vmem>>, vector<8x8xf32>,
    %c3 = arith.constant 3 : index
    %c0_29 = arith.constant 0 : index
    %36 = tpu.strided_load %arg9[%c3, %c0_29] {strides = array<i32: 4, 1>} : memref<32x8xf32, #tpu.memory_space<vmem>>, vector<8x8xf32>
    %c0_30 = arith.constant 0 : index
    %c24 = arith.constant 24 : index
    %37 = vector.load %arg10[%c0_30, %c24] : memref<8x128xf32, #tpu.memory_space<vmem>>, vector<8x8xf32>
    tpu.vector_store %arg10[%c0_30, %c24], %36 {strides = array<i32>} : memref<8x128xf32, #tpu.memory_space<vmem>>, vector<8x8xf32>,
    %c0_31 = arith.constant 0 : index
    %c0_32 = arith.constant 0 : index
    %38 = vector.load %arg10[%c0_31, %c0_32] : memref<8x128xf32, #tpu.memory_space<vmem>>, vector<8x128xf32>
    %39 = arith.truncf %38 : vector<8x128xf32> to vector<8x128xbf16>
    %c0_33 = arith.constant 0 : index
    %c0_34 = arith.constant 0 : index
    %40 = vector.load %arg6[%c0_33, %c0_34] : memref<128x128xbf16, #tpu.memory_space<vmem>>, vector<128x128xbf16>
    %cst_35 = arith.constant dense<0.000000e+00> : vector<8x128xf32>
    %41 = tpu.matmul %39, %40, %cst_35 {dimension_numbers = #tpu.dot_dimension_numbers<[1], [0], [0], [1], [0, 0, 1, 1], [], []>} : vector<8x128xbf16>, vector<128x128xbf16>, vector<8x128xf32> -> vector<8x128xf32>
    %c0_36 = arith.constant 0 : index
    %c0_37 = arith.constant 0 : index
    %42 = vector.load %arg7[%c0_36, %c0_37] : memref<1x128xf32, #tpu.memory_space<vmem>>, vector<1x128xf32>
    %43 = vector.broadcast %42 : vector<1x128xf32> to vector<8x128xf32>
    %44 = arith.addf %41, %43 : vector<8x128xf32>
    %c0_38 = arith.constant 0 : index
    %c0_39 = arith.constant 0 : index
    %45 = vector.load %arg8[%c0_38, %c0_39] : memref<8x128xf32, #tpu.memory_space<vmem>>, vector<8x128xf32>
    tpu.vector_store %arg8[%c0_38, %c0_39], %44 {strides = array<i32>} : memref<8x128xf32, #tpu.memory_space<vmem>>, vector<8x128xf32>,
    return
  }
}

</mosaic_0001>

<llo_original>
// kernel: tpu_custom_call.1
$region0: #{tpu_custom_call.1}
  #allocation0 [shape = 'u32[]', space=smem, size = 0x4, offset = 0x4, fixed_abs, tag = 'smem constant byte address 0x4 - core index']
  #allocation1 [shape = 'u32[144,128]{1,0:T(1,128)}', space=vmem, size = 0x12000, scoped, tag = 'internal scratch']
  #allocation2 [shape = 'f32[32,8]{1,0:T(8,128)}', space=vmem, size = 0x4000, scoped, tag = 'scratch operand']
  #allocation3 [shape = 'f32[8,128]{1,0:T(8,128)}', space=vmem, size = 0x1000, scoped, tag = 'scratch operand']
  %s0 = inlined_call_operand.vmem [shape: bf16[8,128], index: 0, kind: input, shape index: {}]
  %s1 = inlined_call_operand.hbm [shape: bf16[128,256], index: 1, kind: input, shape index: {}]
  %s2 = inlined_call_operand.vmem [shape: f32[1,256], index: 2, kind: input, shape index: {}]
  %s3 = inlined_call_operand.vmem [shape: bf16[32,128], index: 3, kind: input, shape index: {}]
  %s4 = inlined_call_operand.vmem [shape: f32[32,1], index: 4, kind: input, shape index: {}]
  %s5 = inlined_call_operand.vmem [shape: f32[1,128], index: 5, kind: input, shape index: {}]
  %s6 = inlined_call_operand.hbm [shape: bf16[128,128], index: 6, kind: input, shape index: {}]
  %s7 = inlined_call_operand.vmem [shape: f32[1,128], index: 7, kind: input, shape index: {}]
  %s8 = inlined_call_operand.hbm [shape: f32[8,128], index: 8, kind: output, shape index: {}]
  %s9 = sld [smem:[#allocation0]]
  $region50: #{tpu_custom_call.1} parent=0
    _
  %s11 = ssub.s32 1, %s9
  %s12 = scalar_select 0, %s11, %s9
  $region1: #{tpu_custom_call.1} parent=0
    #allocation4 [shape = 'u8[65536]{0}', space=vmem, size = 0x10000, scoped, tag = 'input window, operand 1, single buffered']
    #allocation5 [shape = 's32[1]{0}', space=sflag, size = 0x4, scoped, tag = 'scoped memory for tpu_custom_call.1']
    #allocation6 [shape = 's32[1]{0}', space=sflag, size = 0x4, scoped, tag = 'scoped memory for tpu_custom_call.1']
    #allocation7 [shape = 'u8[32768]{0}', space=vmem, size = 0x8000, scoped, tag = 'input window, operand 6, single buffered']
    #allocation8 [shape = 's32[1]{0}', space=sflag, size = 0x4, scoped, tag = 'scoped memory for tpu_custom_call.1']
    #allocation9 [shape = 'u8[4096]{0}', space=vmem, size = 0x1000, scoped, tag = 'output window, operand 0, single buffered']
    %13 = vsyncpa [#allocation5], 0
    %14 = vsyncpa [#allocation8], 0
    %15 = vsyncpa [#allocation6], 0
    // Predicated region
    $region2: #{tpu_custom_call.1} parent=1 // pred_check
      _
    $region3: #{tpu_custom_call.1} parent=1 // pred_check_branch
      %17 = sbr.rel (0) target = $region5
    $region4: #{tpu_custom_call.1} parent=1 // pred_region
      _
    $region5: #{tpu_custom_call.1} parent=1 // pred_fallthru
      _
    // Predicated region
    $region6: #{tpu_custom_call.1} parent=1 // pred_check
      _
    $region7: #{tpu_custom_call.1} parent=1 // pred_check_branch
      %19 = sbr.rel (0) target = $region9
    $region8: #{tpu_custom_call.1} parent=1 // pred_region
      %s21 = ssub.s32 2048, 2048
      %22 = vsyncadd [#allocation5], %s21
      %s23 = sshll.u32 [#allocation4], 4
      %s24 = int_to_ptr.vmem [resolvable:$true] %s23
      %29 = dma.hbm_to_vmem [thread:$0]  %s1, 2048, %s24, [#allocation5], 128, 128, 8
    $region9: #{tpu_custom_call.1} parent=1 // pred_fallthru
      _
    // Predicated region
    $region10: #{tpu_custom_call.1} parent=1 // pred_check
      _
    $region11: #{tpu_custom_call.1} parent=1 // pred_check_branch
      %31 = sbr.rel (0) target = $region13
    $region12: #{tpu_custom_call.1} parent=1 // pred_region
      _
    $region13: #{tpu_custom_call.1} parent=1 // pred_fallthru
      _
    // Predicated region
    $region14: #{tpu_custom_call.1} parent=1 // pred_check
      _
    $region15: #{tpu_custom_call.1} parent=1 // pred_check_branch
      %33 = sbr.rel (0) target = $region17
    $region16: #{tpu_custom_call.1} parent=1 // pred_region
      _
    $region17: #{tpu_custom_call.1} parent=1 // pred_fallthru
      _
    // Predicated region
    $region18: #{tpu_custom_call.1} parent=1 // pred_check
      _
    $region19: #{tpu_custom_call.1} parent=1 // pred_check_branch
      %35 = sbr.rel (0) target = $region21
    $region20: #{tpu_custom_call.1} parent=1 // pred_region
      _
    $region21: #{tpu_custom_call.1} parent=1 // pred_fallthru
      _
    // Predicated region
    $region22: #{tpu_custom_call.1} parent=1 // pred_check
      _
    $region23: #{tpu_custom_call.1} parent=1 // pred_check_branch
      %37 = sbr.rel (0) target = $region25
    $region24: #{tpu_custom_call.1} parent=1 // pred_region
      _
    $region25: #{tpu_custom_call.1} parent=1 // pred_fallthru
      _
    // Predicated region
    $region26: #{tpu_custom_call.1} parent=1 // pred_check
      _
    $region27: #{tpu_custom_call.1} parent=1 // pred_check_branch
      %39 = sbr.rel (0) target = $region29
    $region28: #{tpu_custom_call.1} parent=1 // pred_region
      %s41 = ssub.s32 1024, 1024
      %42 = vsyncadd [#allocation8], %s41
      %s43 = sshll.u32 [#allocation7], 4
      %s44 = int_to_ptr.vmem [resolvable:$true] %s43
      %49 = dma.hbm_to_vmem [thread:$0]  %s6, 1024, %s44, [#allocation8], 64, 64, 4
    $region29: #{tpu_custom_call.1} parent=1 // pred_fallthru
      _
    // Predicated region
    $region30: #{tpu_custom_call.1} parent=1 // pred_check
      _
    $region31: #{tpu_custom_call.1} parent=1 // pred_check_branch
      %51 = sbr.rel (0) target = $region33
    $region32: #{tpu_custom_call.1} parent=1 // pred_region
      _
    $region33: #{tpu_custom_call.1} parent=1 // pred_fallthru
      _
    // Predicated region
    $region34: #{tpu_custom_call.1} parent=1 // pred_check
      _
    $region35: #{tpu_custom_call.1} parent=1 // pred_check_branch
      %53 = sbr.rel (0) target = $region37
    $region36: #{tpu_custom_call.1} parent=1 // pred_region
      %54 = dma.done [#allocation5], 2048
    $region37: #{tpu_custom_call.1} parent=1 // pred_fallthru
      _
    // Predicated region
    $region38: #{tpu_custom_call.1} parent=1 // pred_check
      _
    $region39: #{tpu_custom_call.1} parent=1 // pred_check_branch
      %56 = sbr.rel (0) target = $region41
    $region40: #{tpu_custom_call.1} parent=1 // pred_region
      %57 = dma.done [#allocation8], 1024
    $region41: #{tpu_custom_call.1} parent=1 // pred_fallthru
      _
    %v59 = vld [vmem:[%s0] sm:$0xf]
    %v60 = vld [vmem:[#allocation4] sm:$0xff]
    %v61 = vld [vmem:[#allocation4 + $0x8] sm:$0xff]
    %v62 = vld [vmem:[#allocation4 + $0x10] sm:$0xff]
    %v63 = vld [vmem:[#allocation4 + $0x18] sm:$0xff]
    %v64 = vld [vmem:[#allocation4 + $0x20] sm:$0xff]
    %v65 = vld [vmem:[#allocation4 + $0x28] sm:$0xff]
    %v66 = vld [vmem:[#allocation4 + $0x30] sm:$0xff]
    %v67 = vld [vmem:[#allocation4 + $0x38] sm:$0xff]
    %v68 = vld [vmem:[#allocation4 + $0x40] sm:$0xff]
    %v69 = vld [vmem:[#allocation4 + $0x48] sm:$0xff]
    %v70 = vld [vmem:[#allocation4 + $0x50] sm:$0xff]
    %v71 = vld [vmem:[#allocation4 + $0x58] sm:$0xff]
    %v72 = vld [vmem:[#allocation4 + $0x60] sm:$0xff]
    %v73 = vld [vmem:[#allocation4 + $0x68] sm:$0xff]
    %v74 = vld [vmem:[#allocation4 + $0x70] sm:$0xff]
    %v75 = vld [vmem:[#allocation4 + $0x78] sm:$0xff]
    %v76 = vld [vmem:[%s2] sm:$0x3]
    %v78 = vlaneseq
    %v79 = vshrl.u32 %v78, 7
    %v80 = vsub.s32 0, %v79
    %v81 = vrot.slane %v76, %v80
    %v82 = vlaneseq
    %v83 = vshrl.u32 %v82, 7
    %v84 = vsub.s32 1, %v83
    %v85 = vrot.slane %v76, %v84
    %v104 = vunpack.c.l.b16 %v60
    %v105 = vunpack.c.h.b16 %v60
    %v106 = vunpack.c.l.b16 %v61
    %v107 = vunpack.c.h.b16 %v61
    %v108 = vunpack.c.l.b16 %v62
    %v109 = vunpack.c.h.b16 %v62
    %v110 = vunpack.c.l.b16 %v63
    %v111 = vunpack.c.h.b16 %v63
    %v112 = vunpack.c.l.b16 %v64
    %v113 = vunpack.c.h.b16 %v64
    %v114 = vunpack.c.l.b16 %v65
    %v115 = vunpack.c.h.b16 %v65
    %v116 = vunpack.c.l.b16 %v66
    %v117 = vunpack.c.h.b16 %v66
    %v118 = vunpack.c.l.b16 %v67
    %v119 = vunpack.c.h.b16 %v67
    %v120 = vunpack.c.l.b16 %v68
    %v121 = vunpack.c.h.b16 %v68
    %v122 = vunpack.c.l.b16 %v69
    %v123 = vunpack.c.h.b16 %v69
    %v124 = vunpack.c.l.b16 %v70
    %v125 = vunpack.c.h.b16 %v70
    %v126 = vunpack.c.l.b16 %v71
    %v127 = vunpack.c.h.b16 %v71
    %v128 = vunpack.c.l.b16 %v72
    %v129 = vunpack.c.h.b16 %v72
    %v130 = vunpack.c.l.b16 %v73
    %v131 = vunpack.c.h.b16 %v73
    %v132 = vunpack.c.l.b16 %v74
    %v133 = vunpack.c.h.b16 %v74
    %v134 = vunpack.c.l.b16 %v75
    %v135 = vunpack.c.h.b16 %v75
    %v136 = vpack.c.b16 %v106, %v104
    %v137 = vpack.c.b16 %v107, %v105
    %v138 = vpack.c.b16 %v110, %v108
    %v139 = vpack.c.b16 %v111, %v109
    %v140 = vpack.c.b16 %v114, %v112
    %v141 = vpack.c.b16 %v115, %v113
    %v142 = vpack.c.b16 %v118, %v116
    %v143 = vpack.c.b16 %v119, %v117
    %v144 = vpack.c.b16 %v122, %v120
    %v145 = vpack.c.b16 %v123, %v121
    %v146 = vpack.c.b16 %v126, %v124
    %v147 = vpack.c.b16 %v127, %v125
    %v148 = vpack.c.b16 %v130, %v128
    %v149 = vpack.c.b16 %v131, %v129
    %v150 = vpack.c.b16 %v134, %v132
    %v151 = vpack.c.b16 %v135, %v133
    %168 = vmatprep.subr.bf16.mxu0 %v137
    %169 = vmatpush1.bf16.msra.mxu0 %v136
    %170 = vmatprep.subr.bf16.mxu0 %v139
    %171 = vmatpush1.bf16.msra.mxu0 %v138
    %172 = vmatprep.subr.bf16.mxu0 %v141
    %173 = vmatpush1.bf16.msra.mxu0 %v140
    %174 = vmatprep.subr.bf16.mxu0 %v143
    %175 = vmatpush1.bf16.msra.mxu0 %v142
    %176 = vmatprep.subr.bf16.mxu0 %v145
    %177 = vmatpush1.bf16.msra.mxu0 %v144
    %178 = vmatprep.subr.bf16.mxu0 %v147
    %179 = vmatpush1.bf16.msra.mxu0 %v146
    %180 = vmatprep.subr.bf16.mxu0 %v149
    %181 = vmatpush1.bf16.msra.mxu0 %v148
    %182 = vmatprep.subr.bf16.mxu0 %v151
    %183 = vmatpush1.bf16.msra.mxu0 %v150
    %184 = vmatprep.subr.bf16.mxu0 0
    %185 = vmatpush1.bf16.msra.mxu0 0
    %186 = vmatprep.subr.bf16.mxu0 0
    %187 = vmatpush1.bf16.msra.mxu0 0
    %188 = vmatprep.subr.bf16.mxu0 0
    %189 = vmatpush1.bf16.msra.mxu0 0
    %190 = vmatprep.subr.bf16.mxu0 0
    %191 = vmatpush1.bf16.msra.mxu0 0
    %192 = vmatprep.subr.bf16.mxu0 0
    %193 = vmatpush1.bf16.msra.mxu0 0
    %194 = vmatprep.subr.bf16.mxu0 0
    %195 = vmatpush1.bf16.msra.mxu0 0
    %196 = vmatprep.subr.bf16.mxu0 0
    %197 = vmatpush1.bf16.msra.mxu0 0
    %198 = vmatprep.subr.bf16.mxu0 0
    %199 = vmatpush1.bf16.msra.mxu0 0
    %200 = vmatprep.mubr.bf16.mxu0 0
    %201 = vmatmul.mubr.bf16.gmra.mrb[0].mxu0 %v59
    %v202 = vpop.f32.mrb[0].mxu0
    %v203 = vadd.f32 %v81, %v202
    %v204 = vpop.f32.mrb[0].mxu0
    %v205 = vadd.f32 %v85, %v204
    %v206 = vpop.f32.mrb[0].mxu0
    %v207 = vpop.f32.mrb[0].mxu0
    %208 = vdwg.mxu0
    %v209 = vld [vmem:[%s3] sm:$0xf]
    %v210 = vld [vmem:[%s3 + $0x4] sm:$0xf]
    %v211 = vld [vmem:[%s3 + $0x8] sm:$0xf]
    %v212 = vld [vmem:[%s3 + $0xc] sm:$0xf]
    %v213 = vld [vmem:[%s4] sm:$0xff]
    %v214 = vld [vmem:[%s4 + $0x8] sm:$0xff]
    %v215 = vld [vmem:[%s4 + $0x10] sm:$0xff]
    %v216 = vld [vmem:[%s4 + $0x18] sm:$0xff]
    %218 = vset.pattern.permute.xlu0 0
    %219 = vperm.xlu0 %218, %v213
    %v220 = vpop.permute.xlu0 %219
    %223 = vset.pattern.permute.xlu0 0
    %224 = vperm.xlu0 %223, %v214
    %v225 = vpop.permute.xlu0 %224
    %228 = vset.pattern.permute.xlu0 0
    %229 = vperm.xlu0 %228, %v215
    %v230 = vpop.permute.xlu0 %229
    %233 = vset.pattern.permute.xlu0 0
    %234 = vperm.xlu0 %233, %v216
    %v235 = vpop.permute.xlu0 %234
    %v241 = vunpack.c.l.b16 %v209
    %v242 = vunpack.c.l.b16 %v210
    %v243 = vunpack.c.l.b16 %v211
    %v244 = vunpack.c.l.b16 %v212
    %v245 = vpack.c.b16 %v242, %v241
    %v246 = vpack.c.b16 %v244, %v243
    %249 = vmatprep.subr.bf16.mxu0 0
    %250 = vmatpush1.bf16.xpose.msra.mxu0 %v59
    %251 = vmatprep.subr.bf16.mxu0 0
    %252 = vmatpush1.bf16.xpose.msra.mxu0 0
    %253 = vmatprep.subr.bf16.mxu0 0
    %254 = vmatpush1.bf16.xpose.msra.mxu0 0
    %255 = vmatprep.subr.bf16.mxu0 0
    %256 = vmatpush1.bf16.xpose.msra.mxu0 0
    %257 = vmatprep.subr.bf16.mxu0 0
    %258 = vmatpush1.bf16.xpose.msra.mxu0 0
    %259 = vmatprep.subr.bf16.mxu0 0
    %260 = vmatpush1.bf16.xpose.msra.mxu0 0
    %261 = vmatprep.subr.bf16.mxu0 0
    %262 = vmatpush1.bf16.xpose.msra.mxu0 0
    %263 = vmatprep.subr.bf16.mxu0 0
    %264 = vmatpush1.bf16.xpose.msra.mxu0 0
    %265 = vmatprep.subr.bf16.mxu0 0
    %266 = vmatpush1.bf16.xpose.msra.mxu0 0
    %267 = vmatprep.subr.bf16.mxu0 0
    %268 = vmatpush1.bf16.xpose.msra.mxu0 0
    %269 = vmatprep.subr.bf16.mxu0 0
    %270 = vmatpush1.bf16.xpose.msra.mxu0 0
    %271 = vmatprep.subr.bf16.mxu0 0
    %272 = vmatpush1.bf16.xpose.msra.mxu0 0
    %273 = vmatprep.subr.bf16.mxu0 0
    %274 = vmatpush1.bf16.xpose.msra.mxu0 0
    %275 = vmatprep.subr.bf16.mxu0 0
    %276 = vmatpush1.bf16.xpose.msra.mxu0 0
    %277 = vmatprep.subr.bf16.mxu0 0
    %278 = vmatpush1.bf16.xpose.msra.mxu0 0
    %279 = vmatprep.subr.bf16.mxu0 0
    %280 = vmatpush1.bf16.xpose.msra.mxu0 0
    %281 = vmatprep.mubr.bf16.mxu0 0
    %282 = vmatmul.mubr.bf16.gmra.mrb[0].mxu0 %v245
    %v283 = vpop.f32.mrb[0].mxu0
    %v284 = vadd.f32 %v220, %v283
    %v285 = vpop.f32.mrb[0].mxu0
    %v286 = vpop.f32.mrb[0].mxu0
    %v287 = vadd.f32 %v225, %v286
    %v288 = vpop.f32.mrb[0].mxu0
    %289 = vmatprep.mubr.bf16.mxu0 0
    %290 = vmatmul.mubr.bf16.gmra.mrb[0].mxu0 %v246
    %v291 = vpop.f32.mrb[0].mxu0
    %v292 = vadd.f32 %v230, %v291
    %v293 = vpop.f32.mrb[0].mxu0
    %v294 = vpop.f32.mrb[0].mxu0
    %v295 = vadd.f32 %v235, %v294
    %v296 = vpop.f32.mrb[0].mxu0
    %297 = vdwg.mxu0
    %v298 = vld [vmem:[%s5] sm:$0x1]
    %v300 = vlaneseq
    %v301 = vshrl.u32 %v300, 7
    %v302 = vsub.s32 0, %v301
    %v303 = vrot.slane %v298, %v302
    %vm305 = vcmask 64512
    %v307 = vsel %vm305, %v284, 0
    %v310 = vsel %vm305, %v287, 0
    %v313 = vsel %vm305, %v292, 0
    %v316 = vsel %vm305, %v295, 0
    %318 = vmatprep.subr.mxu0 0.0
    %319 = vmatpush1.msra.mxu0 %v203
    %320 = vmatprep.subr.mxu0 0.0
    %321 = vmatpush1.msra.mxu0 0.0
    %322 = vmatprep.subr.mxu0 0.0
    %323 = vmatpush1.msra.mxu0 0.0
    %324 = vmatprep.subr.mxu0 0.0
    %325 = vmatpush1.msra.mxu0 0.0
    %326 = vmatprep.subr.mxu0 0.0
    %327 = vmatpush1.msra.mxu0 0.0
    %328 = vmatprep.subr.mxu0 0.0
    %329 = vmatpush1.msra.mxu0 0.0
    %330 = vmatprep.subr.mxu0 0.0
    %331 = vmatpush1.msra.mxu0 0.0
    %332 = vmatprep.subr.mxu0 0.0
    %333 = vmatpush1.msra.mxu0 0.0
    %334 = vmatprep.subr.mxu0 0.0
    %335 = vmatpush1.msra.mxu0 0.0
    %336 = vmatprep.subr.mxu0 0.0
    %337 = vmatpush1.msra.mxu0 0.0
    %338 = vmatprep.subr.mxu0 0.0
    %339 = vmatpush1.msra.mxu0 0.0
    %340 = vmatprep.subr.mxu0 0.0
    %341 = vmatpush1.msra.mxu0 0.0
    %342 = vmatprep.subr.mxu0 0.0
    %343 = vmatpush1.msra.mxu0 0.0
    %344 = vmatprep.subr.mxu0 0.0
    %345 = vmatpush1.msra.mxu0 0.0
    %346 = vmatprep.subr.mxu0 0.0
    %347 = vmatpush1.msra.mxu0 0.0
    %348 = vmatprep.subr.mxu0 0.0
    %349 = vmatpush1.msra.mxu0 0.0
    %350 = vmatprep.subr.mxu0 0.0
    %351 = vmatpush1.msra.mxu0 0.0
    %352 = vmatprep.subr.mxu0 0.0
    %353 = vmatpush1.msra.mxu0 0.0
    %354 = vmatprep.subr.mxu0 0.0
    %355 = vmatpush1.msra.mxu0 0.0
    %356 = vmatprep.subr.mxu0 0.0
    %357 = vmatpush1.msra.mxu0 0.0
    %358 = vmatprep.subr.mxu0 0.0
    %359 = vmatpush1.msra.mxu0 0.0
    %360 = vmatprep.subr.mxu0 0.0
    %361 = vmatpush1.msra.mxu0 0.0
    %362 = vmatprep.subr.mxu0 0.0
    %363 = vmatpush1.msra.mxu0 0.0
    %364 = vmatprep.subr.mxu0 0.0
    %365 = vmatpush1.msra.mxu0 0.0
    %366 = vmatprep.subr.mxu0 0.0
    %367 = vmatpush1.msra.mxu0 0.0
    %368 = vmatprep.subr.mxu0 0.0
    %369 = vmatpush1.msra.mxu0 0.0
    %370 = vmatprep.subr.mxu0 0.0
    %371 = vmatpush1.msra.mxu0 0.0
    %372 = vmatprep.subr.mxu0 0.0
    %373 = vmatpush1.msra.mxu0 0.0
    %374 = vmatprep.subr.mxu0 0.0
    %375 = vmatpush1.msra.mxu0 0.0
    %376 = vmatprep.subr.mxu0 0.0
    %377 = vmatpush1.msra.mxu0 0.0
    %378 = vmatprep.subr.mxu0 0.0
    %379 = vmatpush1.msra.mxu0 0.0
    %380 = vmatprep.subr.mxu0 0.0
    %381 = vmatpush1.msra.mxu0 0.0
    %382 = vmatprep.mubr.f32.mxu0 0.0
    %383 = vmatmul.mubr.f32.gmra.mrb[0].mxu0 %v307
    %v384 = vpop.f32.mrb[0].mxu0
    %v385 = vadd.f32 %v303, %v384
    %v386 = vpop.f32.mrb[0].mxu0
    %387 = vmatprep.mubr.f32.mxu0 0.0
    %388 = vmatmul.mubr.f32.gmra.mrb[0].mxu0 %v310
    %v389 = vpop.f32.mrb[0].mxu0
    %v390 = vadd.f32 %v303, %v389
    %v391 = vpop.f32.mrb[0].mxu0
    %392 = vmatprep.mubr.f32.mxu0 0.0
    %393 = vmatmul.mubr.f32.gmra.mrb[0].mxu0 %v313
    %v394 = vpop.f32.mrb[0].mxu0
    %v395 = vadd.f32 %v303, %v394
    %v396 = vpop.f32.mrb[0].mxu0
    %397 = vmatprep.mubr.f32.mxu0 0.0
    %398 = vmatmul.mubr.f32.gmra.mrb[0].mxu0 %v316
    %v399 = vpop.f32.mrb[0].mxu0
    %v400 = vadd.f32 %v303, %v399
    %v401 = vpop.f32.mrb[0].mxu0
    %402 = vdwg.mxu0
    %403 = vmax.xlane.f32.xlu0 %v385
    %v404 = vpop.xlane.xlu0 %403
    %405 = vmax.xlane.f32.xlu0 %v390
    %v406 = vpop.xlane.xlu0 %405
    %407 = vmax.xlane.f32.xlu0 %v395
    %v408 = vpop.xlane.xlu0 %407
    %409 = vmax.xlane.f32.xlu0 %v400
    %v410 = vpop.xlane.xlu0 %409
    %v411 = vsub.f32 %v385, %v404
    %v412 = vsub.f32 %v390, %v406
    %v413 = vsub.f32 %v395, %v408
    %v414 = vsub.f32 %v400, %v410
    %v415 = vmul.f32 %v411, 1.442695
    %v416 = vpow.pop %v415
    %v417 = vmul.f32 %v412, 1.442695
    %v418 = vpow.pop %v417
    %v419 = vmul.f32 %v413, 1.442695
    %v420 = vpow.pop %v419
    %v421 = vmul.f32 %v414, 1.442695
    %v422 = vpow.pop %v421
    %423 = vadd.xlane.f32.xlu0 %v416
    %v424 = vpop.xlane.xlu0 %423
    %425 = vadd.xlane.f32.xlu0 %v418
    %v426 = vpop.xlane.xlu0 %425
    %427 = vadd.xlane.f32.xlu0 %v420
    %v428 = vpop.xlane.xlu0 %427
    %429 = vadd.xlane.f32.xlu0 %v422
    %v430 = vpop.xlane.xlu0 %429
    %v431 = vrcp.pop %v424
    %v432 = vmul.f32 %v416, %v431
    %v433 = vrcp.pop %v426
    %v434 = vmul.f32 %v418, %v433
    %v435 = vrcp.pop %v428
    %v436 = vmul.f32 %v420, %v435
    %v437 = vrcp.pop %v430
    %v438 = vmul.f32 %v422, %v437
    %439 = vmatprep.subr.mxu0 0.0
    %440 = vmatpush1.xpose.msra.mxu0 %v205
    %441 = vmatprep.subr.mxu0 0.0
    %442 = vmatpush1.xpose.msra.mxu0 0.0
    %443 = vmatprep.subr.mxu0 0.0
    %444 = vmatpush1.xpose.msra.mxu0 0.0
    %445 = vmatprep.subr.mxu0 0.0
    %446 = vmatpush1.xpose.msra.mxu0 0.0
    %447 = vmatprep.subr.mxu0 0.0
    %448 = vmatpush1.xpose.msra.mxu0 0.0
    %449 = vmatprep.subr.mxu0 0.0
    %450 = vmatpush1.xpose.msra.mxu0 0.0
    %451 = vmatprep.subr.mxu0 0.0
    %452 = vmatpush1.xpose.msra.mxu0 0.0
    %453 = vmatprep.subr.mxu0 0.0
    %454 = vmatpush1.xpose.msra.mxu0 0.0
    %455 = vmatprep.subr.mxu0 0.0
    %456 = vmatpush1.xpose.msra.mxu0 0.0
    %457 = vmatprep.subr.mxu0 0.0
    %458 = vmatpush1.xpose.msra.mxu0 0.0
    %459 = vmatprep.subr.mxu0 0.0
    %460 = vmatpush1.xpose.msra.mxu0 0.0
    %461 = vmatprep.subr.mxu0 0.0
    %462 = vmatpush1.xpose.msra.mxu0 0.0
    %463 = vmatprep.subr.mxu0 0.0
    %464 = vmatpush1.xpose.msra.mxu0 0.0
    %465 = vmatprep.subr.mxu0 0.0
    %466 = vmatpush1.xpose.msra.mxu0 0.0
    %467 = vmatprep.subr.mxu0 0.0
    %468 = vmatpush1.xpose.msra.mxu0 0.0
    %469 = vmatprep.subr.mxu0 0.0
    %470 = vmatpush1.xpose.msra.mxu0 0.0
    %471 = vmatprep.subr.mxu0 0.0
    %472 = vmatpush1.xpose.msra.mxu0 0.0
    %473 = vmatprep.subr.mxu0 0.0
    %474 = vmatpush1.xpose.msra.mxu0 0.0
    %475 = vmatprep.subr.mxu0 0.0
    %476 = vmatpush1.xpose.msra.mxu0 0.0
    %477 = vmatprep.subr.mxu0 0.0
    %478 = vmatpush1.xpose.msra.mxu0 0.0
    %479 = vmatprep.subr.mxu0 0.0
    %480 = vmatpush1.xpose.msra.mxu0 0.0
    %481 = vmatprep.subr.mxu0 0.0
    %482 = vmatpush1.xpose.msra.mxu0 0.0
    %483 = vmatprep.subr.mxu0 0.0
    %484 = vmatpush1.xpose.msra.mxu0 0.0
    %485 = vmatprep.subr.mxu0 0.0
    %486 = vmatpush1.xpose.msra.mxu0 0.0
    %487 = vmatprep.subr.mxu0 0.0
    %488 = vmatpush1.xpose.msra.mxu0 0.0
    %489 = vmatprep.subr.mxu0 0.0
    %490 = vmatpush1.xpose.msra.mxu0 0.0
    %491 = vmatprep.subr.mxu0 0.0
    %492 = vmatpush1.xpose.msra.mxu0 0.0
    %493 = vmatprep.subr.mxu0 0.0
    %494 = vmatpush1.xpose.msra.mxu0 0.0
    %495 = vmatprep.subr.mxu0 0.0
    %496 = vmatpush1.xpose.msra.mxu0 0.0
    %497 = vmatprep.subr.mxu0 0.0
    %498 = vmatpush1.xpose.msra.mxu0 0.0
    %499 = vmatprep.subr.mxu0 0.0
    %500 = vmatpush1.xpose.msra.mxu0 0.0
    %501 = vmatprep.subr.mxu0 0.0
    %502 = vmatpush1.xpose.msra.mxu0 0.0
    %503 = vmatprep.mubr.f32.mxu0 0.0
    %504 = vmatmul.mubr.f32.gmra.mrb[0].mxu0 %v432
    %v505 = vpop.f32.mrb[0].mxu0
    %v506 = vadd.f32 0.0, %v505
    %v507 = vpop.f32.mrb[0].mxu0
    %508 = vmatprep.mubr.f32.mxu0 0.0
    %509 = vmatmul.mubr.f32.gmra.mrb[0].mxu0 %v434
    %v510 = vpop.f32.mrb[0].mxu0
    %v511 = vadd.f32 0.0, %v510
    %v512 = vpop.f32.mrb[0].mxu0
    %513 = vmatprep.mubr.f32.mxu0 0.0
    %514 = vmatmul.mubr.f32.gmra.mrb[0].mxu0 %v436
    %v515 = vpop.f32.mrb[0].mxu0
    %v516 = vadd.f32 0.0, %v515
    %v517 = vpop.f32.mrb[0].mxu0
    %518 = vmatprep.mubr.f32.mxu0 0.0
    %519 = vmatmul.mubr.f32.gmra.mrb[0].mxu0 %v438
    %v520 = vpop.f32.mrb[0].mxu0
    %v521 = vadd.f32 0.0, %v520
    %v522 = vpop.f32.mrb[0].mxu0
    %523 = vdwg.mxu0
    %524 = vst.msk [vmem:[#allocation2] sm:$0xff] %vm305, %v506
    %525 = vst.msk [vmem:[#allocation2 + $0x8] sm:$0xff] %vm305, %v511
    %526 = vst.msk [vmem:[#allocation2 + $0x10] sm:$0xff] %vm305, %v516
    %527 = vst.msk [vmem:[#allocation2 + $0x18] sm:$0xff] %vm305, %v521
    %528 = vst [vmem:[#allocation3] sm:$0xff] 0.0
    %v529 = vld [vmem:[#allocation2] ss:$4 sm:$0xff]
    %530 = vst.msk [vmem:[#allocation3] sm:$0xff] %vm305, %v529
    %s531 = scalar_lea.vmem [#allocation2], 1
    %v532 = vld [vmem:[%s531] ss:$4 sm:$0xff]
    %534 = vrot.lane.b32.xlu0 %v532, 8
    %v535 = vpop.permute.xlu0 %534
    %vm537 = vcmask 130112
    %538 = vst.msk [vmem:[#allocation3] sm:$0xff] %vm537, %v535
    %s539 = scalar_lea.vmem [#allocation2], 2
    %v540 = vld [vmem:[%s539] ss:$4 sm:$0xff]
    %542 = vrot.lane.b32.xlu0 %v540, 16
    %v543 = vpop.permute.xlu0 %542
    %vm545 = vcmask 195712
    %546 = vst.msk [vmem:[#allocation3] sm:$0xff] %vm545, %v543
    %s547 = scalar_lea.vmem [#allocation2], 3
    %v548 = vld [vmem:[%s547] ss:$4 sm:$0xff]
    %550 = vrot.lane.b32.xlu0 %v548, 24
    %v551 = vpop.permute.xlu0 %550
    %vm553 = vcmask 261312
    %554 = vst.msk [vmem:[#allocation3] sm:$0xff] %vm553, %v551
    %v555 = vld [vmem:[#allocation3] sm:$0xff]
    %v556 = vpack.c.bf16 %v555, %v555
    %v557 = vld [vmem:[#allocation7] sm:$0xf]
    %v558 = vld [vmem:[#allocation7 + $0x4] sm:$0xf]
    %v559 = vld [vmem:[#allocation7 + $0x8] sm:$0xf]
    %v560 = vld [vmem:[#allocation7 + $0xc] sm:$0xf]
    %v561 = vld [vmem:[#allocation7 + $0x10] sm:$0xf]
    %v562 = vld [vmem:[#allocation7 + $0x14] sm:$0xf]
    %v563 = vld [vmem:[#allocation7 + $0x18] sm:$0xf]
    %v564 = vld [vmem:[#allocation7 + $0x1c] sm:$0xf]
    %v565 = vld [vmem:[#allocation7 + $0x20] sm:$0xf]
    %v566 = vld [vmem:[#allocation7 + $0x24] sm:$0xf]
    %v567 = vld [vmem:[#allocation7 + $0x28] sm:$0xf]
    %v568 = vld [vmem:[#allocation7 + $0x2c] sm:$0xf]
    %v569 = vld [vmem:[#allocation7 + $0x30] sm:$0xf]
    %v570 = vld [vmem:[#allocation7 + $0x34] sm:$0xf]
    %v571 = vld [vmem:[#allocation7 + $0x38] sm:$0xf]
    %v572 = vld [vmem:[#allocation7 + $0x3c] sm:$0xf]
    %v573 = vld [vmem:[%s7] sm:$0x1]
    %v575 = vlaneseq
    %v576 = vshrl.u32 %v575, 7
    %v577 = vsub.s32 0, %v576
    %v578 = vrot.slane %v573, %v577
    %v596 = vunpack.c.l.b16 %v557
    %v597 = vunpack.c.l.b16 %v558
    %v598 = vunpack.c.l.b16 %v559
    %v599 = vunpack.c.l.b16 %v560
    %v600 = vunpack.c.l.b16 %v561
    %v601 = vunpack.c.l.b16 %v562
    %v602 = vunpack.c.l.b16 %v563
    %v603 = vunpack.c.l.b16 %v564
    %v604 = vunpack.c.l.b16 %v565
    %v605 = vunpack.c.l.b16 %v566
    %v606 = vunpack.c.l.b16 %v567
    %v607 = vunpack.c.l.b16 %v568
    %v608 = vunpack.c.l.b16 %v569
    %v609 = vunpack.c.l.b16 %v570
    %v610 = vunpack.c.l.b16 %v571
    %v611 = vunpack.c.l.b16 %v572
    %v612 = vpack.c.b16 %v597, %v596
    %v613 = vpack.c.b16 %v599, %v598
    %v614 = vpack.c.b16 %v601, %v600
    %v615 = vpack.c.b16 %v603, %v602
    %v616 = vpack.c.b16 %v605, %v604
    %v617 = vpack.c.b16 %v607, %v606
    %v618 = vpack.c.b16 %v609, %v608
    %v619 = vpack.c.b16 %v611, %v610
    %628 = vmatprep.subr.bf16.mxu0 0
    %629 = vmatpush1.bf16.msra.mxu0 %v612
    %630 = vmatprep.subr.bf16.mxu0 0
    %631 = vmatpush1.bf16.msra.mxu0 %v613
    %632 = vmatprep.subr.bf16.mxu0 0
    %633 = vmatpush1.bf16.msra.mxu0 %v614
    %634 = vmatprep.subr.bf16.mxu0 0
    %635 = vmatpush1.bf16.msra.mxu0 %v615
    %636 = vmatprep.subr.bf16.mxu0 0
    %637 = vmatpush1.bf16.msra.mxu0 %v616
    %638 = vmatprep.subr.bf16.mxu0 0
    %639 = vmatpush1.bf16.msra.mxu0 %v617
    %640 = vmatprep.subr.bf16.mxu0 0
    %641 = vmatpush1.bf16.msra.mxu0 %v618
    %642 = vmatprep.subr.bf16.mxu0 0
    %643 = vmatpush1.bf16.msra.mxu0 %v619
    %644 = vmatprep.subr.bf16.mxu0 0
    %645 = vmatpush1.bf16.msra.mxu0 0
    %646 = vmatprep.subr.bf16.mxu0 0
    %647 = vmatpush1.bf16.msra.mxu0 0
    %648 = vmatprep.subr.bf16.mxu0 0
    %649 = vmatpush1.bf16.msra.mxu0 0
    %650 = vmatprep.subr.bf16.mxu0 0
    %651 = vmatpush1.bf16.msra.mxu0 0
    %652 = vmatprep.subr.bf16.mxu0 0
    %653 = vmatpush1.bf16.msra.mxu0 0
    %654 = vmatprep.subr.bf16.mxu0 0
    %655 = vmatpush1.bf16.msra.mxu0 0
    %656 = vmatprep.subr.bf16.mxu0 0
    %657 = vmatpush1.bf16.msra.mxu0 0
    %658 = vmatprep.subr.bf16.mxu0 0
    %659 = vmatpush1.bf16.msra.mxu0 0
    %660 = vmatprep.mubr.bf16.mxu0 0
    %661 = vmatmul.mubr.bf16.gmra.mrb[0].mxu0 %v556
    %v662 = vpop.f32.mrb[0].mxu0
    %v663 = vadd.f32 %v578, %v662
    %v664 = vpop.f32.mrb[0].mxu0
    %v665 = vpop.f32.mrb[0].mxu0
    %v666 = vpop.f32.mrb[0].mxu0
    %667 = vdwg.mxu0
    %668 = vst [vmem:[#allocation9] sm:$0xff] %v663
    // Predicated region
    $region42: #{tpu_custom_call.1} parent=1 // pred_check
      _
    $region43: #{tpu_custom_call.1} parent=1 // pred_check_branch
      %670 = sbr.rel (0) target = $region45
    $region44: #{tpu_custom_call.1} parent=1 // pred_region
      %s672 = ssub.s32 128, 128
      %673 = vsyncadd [#allocation6], %s672
      %s675 = sshll.u32 [#allocation9], 4
      %s676 = int_to_ptr.vmem [resolvable:$true] %s675
      %678 = dma.vmem_to_hbm [thread:$0]  %s676, 128, %s8, [#allocation6]
    $region45: #{tpu_custom_call.1} parent=1 // pred_fallthru
      _
    // Predicated region
    $region46: #{tpu_custom_call.1} parent=1 // pred_check
      _
    $region47: #{tpu_custom_call.1} parent=1 // pred_check_branch
      %680 = sbr.rel (0) target = $region49
    $region48: #{tpu_custom_call.1} parent=1 // pred_region
      %681 = dma.done [#allocation6], 128
    $region49: #{tpu_custom_call.1} parent=1 // pred_fallthru
      _
    %682 = vsyncpa [#allocation5], 1
    %683 = vsyncpa [#allocation8], 1
    %684 = vsyncpa [#allocation6], 1

</llo_original>
